<compile_context>
chip_gen: v5e
topology: v5e:2x2
jax: 0.10.0
libtpu: 0.0.40
codegen_flags: <defaults>
</compile_context>

<pallas_src>
import functools

import jax
import jax.numpy as jnp
from jax.experimental import pallas as pl
from jax.experimental.pallas import tpu as pltpu

EPS = 1e-5


def _round_up(x, m):
    return ((x + m - 1) // m) * m


# --------------------------------------------------------------------------
# Pallas kernels
# --------------------------------------------------------------------------
def _conv_mm_kernel(w_ref, p_ref, shift_ref, o_ref):
    """o = relu((scale*W) @ patches^T + shift)  —  (Cout, bm) lane-dense store."""
    acc = jnp.dot(w_ref[...], p_ref[...], preferred_element_type=jnp.float32)
    o_ref[...] = jnp.maximum(acc + shift_ref[...], 0.0)


def _gpool_kernel(x_ref, o_ref, *, inv_count):
    """Global average pool: accumulate spatial partial sums in the resident
    output block, scale by 1/(H*W) on the last grid step."""
    @pl.when(pl.program_id(0) == 0)
    def _():
        o_ref[...] = jnp.zeros_like(o_ref)

    o_ref[...] += jnp.sum(x_ref[...], axis=1, keepdims=True)

    @pl.when(pl.program_id(0) == pl.num_programs(0) - 1)
    def _():
        o_ref[...] *= inv_count


def _merge_upsample_kernel(u1_ref, u1t_ref, u2_ref, u2t_ref, u3_ref, u3t_ref,
                           u8_ref, u8t_ref, c77_ref, c55_ref, c33_ref,
                           c11_ref, pool_ref, o_ref):
    """Fused pyramid merge + final 8x upsample for one (n, c) slice.

    Separable bilinear upsampling: up(U, X) = U @ X @ U^T (two 1-D matmuls).
        a = up2(c77) + c55
        a = up2(a)   + c33
        a = c11 * up2(a) + pool          (pool 1x1 -> HxH upsample == broadcast)
        o = up8(a)
    """
    def up(u_ref, ut_ref, x):
        t = jnp.dot(x.astype(u_ref.dtype), ut_ref[...],
                    preferred_element_type=jnp.float32)
        return jnp.dot(u_ref[...], t.astype(u_ref.dtype),
                       preferred_element_type=jnp.float32)

    a = up(u1_ref, u1t_ref, c77_ref[...]) + c55_ref[...]
    a = up(u2_ref, u2t_ref, a) + c33_ref[...]
    a = c11_ref[...] * up(u3_ref, u3t_ref, a) + pool_ref[...]
    o_ref[...] = up(u8_ref, u8t_ref, a)


# --------------------------------------------------------------------------
# Pallas call wrappers
# --------------------------------------------------------------------------
def conv_bn_relu(x_nchw, p, k, stride, pad):
    """Conv2d(k, stride, pad) + BatchNorm(eval) + ReLU.

    im2col (trace-time glue) -> transposed Pallas matmul so stores are
    lane-dense along the big M = N*Ho*Wo axis.
    """
    cout, cin = p["w"].shape[0], p["w"].shape[1]
    n, c, h, w = x_nchw.shape
    assert c == cin
    ho = (h + 2 * pad - k) // stride + 1
    wo = (w + 2 * pad - k) // stride + 1
    kdim = c * k * k
    m = n * ho * wo

    # im2col, transposed: rows ordered (ci, ky, kx), cols ordered (n, ho, wo).
    xp = jnp.pad(x_nchw, ((0, 0), (0, 0), (pad, pad), (pad, pad)))
    taps = []
    for ky in range(k):
        for kx in range(k):
            taps.append(xp[:, :, ky: ky + stride * (ho - 1) + 1: stride,
                               kx: kx + stride * (wo - 1) + 1: stride])
    pt = jnp.stack(taps, axis=2)                               # (N, C, k*k, Ho, Wo)
    pt = jnp.transpose(pt, (1, 2, 0, 3, 4)).reshape(kdim, m)   # (K, M)

    # Fold BN (eval) scale into the weights; only the shift stays in-kernel.
    scale = p["gamma"] / jnp.sqrt(p["var"] + EPS)
    wmat = (p["w"].reshape(cout, kdim) * scale[:, None]).astype(jnp.bfloat16)
    shift = ((p["b"] - p["mean"]) * scale + p["beta"]).reshape(cout, 1)
    shift = shift.astype(jnp.float32)

    # Pad M to the block size so the row grid pipelines (no "bm = m" fallback).
    if m >= 1024:
        mp, bm = _round_up(m, 1024), 1024
    else:
        mp = _round_up(m, 128)
        bm = mp
    pt = jnp.pad(pt, ((0, 0), (0, mp - m))).astype(jnp.bfloat16)

    out = pl.pallas_call(
        _conv_mm_kernel,
        grid=(mp // bm,),
        in_specs=[
            pl.BlockSpec((cout, kdim), lambda i: (0, 0)),
            pl.BlockSpec((kdim, bm), lambda i: (0, i)),
            pl.BlockSpec((cout, 1), lambda i: (0, 0)),
        ],
        out_specs=pl.BlockSpec((cout, bm), lambda i: (0, i)),
        out_shape=jax.ShapeDtypeStruct((cout, mp), jnp.float32),
        compiler_params=pltpu.CompilerParams(
            dimension_semantics=("parallel",), vmem_limit_bytes=48 << 20),
    )(wmat, pt, shift)

    out = out[:, :m].reshape(cout, n, ho, wo)
    return jnp.transpose(out, (1, 0, 2, 3))          # (N, Cout, Ho, Wo)


def global_avg_pool(x_nchw, spatial_block=2048):
    """Mean over H,W.  (N,C,H,W) -> (N,C); spatial axis tiled + accumulated."""
    n, c, h, w = x_nchw.shape
    hw = h * w
    xs = x_nchw.reshape(n * c, hw)
    bs = min(spatial_block, _round_up(hw, 128))
    hwp = _round_up(hw, bs)
    xs = jnp.pad(xs, ((0, 0), (0, hwp - hw)))        # zero pad: sum unaffected
    out = pl.pallas_call(
        functools.partial(_gpool_kernel, inv_count=1.0 / float(hw)),
        grid=(hwp // bs,),
        in_specs=[pl.BlockSpec((n * c, bs), lambda i: (0, i))],
        out_specs=pl.BlockSpec((n * c, 1), lambda i: (0, 0)),
        out_shape=jax.ShapeDtypeStruct((n * c, 1), jnp.float32),
        compiler_params=pltpu.CompilerParams(
            dimension_semantics=("arbitrary",)),
    )(xs)
    return out.reshape(n, c)


def bilinear_1d_matrix(in_size, out_size):
    """1-D interpolation matrix, align_corners=True (UpsamplingBilinear2d)."""
    if in_size == 1:
        return jnp.ones((out_size, 1), jnp.float32)
    src = jnp.arange(out_size, dtype=jnp.float32) * (in_size - 1) / (out_size - 1)
    f = jnp.floor(src)
    t = src - f
    f0 = jnp.clip(f.astype(jnp.int32), 0, in_size - 1)
    f1 = jnp.clip(f0 + 1, 0, in_size - 1)
    mat = jnp.zeros((out_size, in_size), jnp.float32)
    rows = jnp.arange(out_size)
    mat = mat.at[rows, f0].add(1.0 - t)
    mat = mat.at[rows, f1].add(t)
    return mat


def merge_and_upsample(c77c, c55c, c33c, c11, poolc, h):
    """Fused pyramid fusion + final 8x bilinear upsample, gridded over N*C."""
    n, cout = c11.shape[0], c11.shape[1]
    b = n * cout
    h8, h4, h2, h8x = h // 8, h // 4, h // 2, 8 * h
    bf = jnp.bfloat16

    u1 = bilinear_1d_matrix(h8, h4)        # H/8 -> H/4
    u2 = bilinear_1d_matrix(h4, h2)        # H/4 -> H/2
    u3 = bilinear_1d_matrix(h2, h)         # H/2 -> H
    u8 = bilinear_1d_matrix(h, h8x)        # H   -> 8H   (big one: bf16)

    def mat_spec(shape):
        return pl.BlockSpec(shape, lambda i: (0, 0))

    def img_spec(s):
        return pl.BlockSpec((None, s, s), lambda i: (i, 0, 0))

    out = pl.pallas_call(
        _merge_upsample_kernel,
        grid=(b,),
        in_specs=[
            mat_spec((h4, h8)), mat_spec((h8, h4)),
            mat_spec((h2, h4)), mat_spec((h4, h2)),
            mat_spec((h, h2)), mat_spec((h2, h)),
            mat_spec((h8x, h)), mat_spec((h, h8x)),
            img_spec(h8), img_spec(h4), img_spec(h2), img_spec(h),
            pl.BlockSpec((None, 1, 1), lambda i: (i, 0, 0)),
        ],
        out_specs=pl.BlockSpec((None, h8x, h8x), lambda i: (i, 0, 0)),
        out_shape=jax.ShapeDtypeStruct((b, h8x, h8x), jnp.float32),
        compiler_params=pltpu.CompilerParams(
            dimension_semantics=("parallel",), vmem_limit_bytes=48 << 20),
    )(u1, u1.T, u2, u2.T, u3, u3.T, u8.astype(bf), u8.T.astype(bf),
      c77c.reshape(b, h8, h8), c55c.reshape(b, h4, h4),
      c33c.reshape(b, h2, h2), c11.reshape(b, h, h),
      poolc.reshape(b, 1, 1))
    # (N*C, 8H, 8W) reshapes straight to NCHW — no transpose.
    return out.reshape(n, cout, h8x, h8x)


# --------------------------------------------------------------------------
# Parameter init (matches PyTorch module structure, BN in eval mode)
# --------------------------------------------------------------------------
def init_conv_bn(key, cin, cout, k):
    k1, k2, k3, k4, k5, k6 = jax.random.split(key, 6)
    return dict(
        w=0.1 * jax.random.normal(k1, (cout, cin, k, k), jnp.float32),
        b=0.1 * jax.random.normal(k2, (cout,), jnp.float32),
        gamma=1.0 + 0.1 * jax.random.normal(k3, (cout,), jnp.float32),
        beta=0.1 * jax.random.normal(k4, (cout,), jnp.float32),
        mean=0.1 * jax.random.normal(k5, (cout,), jnp.float32),
        var=jnp.abs(jax.random.normal(k6, (cout,), jnp.float32)) + 0.5,
    )


def init_apn_params(key, cin, cout):
    keys = jax.random.split(key, 8)
    return dict(
        conv_33=init_conv_bn(keys[0], cin, cin, 3),
        conv_55=init_conv_bn(keys[1], cin, cin, 5),
        conv_77=init_conv_bn(keys[2], cin, cin, 7),
        conv_77_toC=init_conv_bn(keys[3], cin, cout, 1),
        conv_55_toC=init_conv_bn(keys[4], cin, cout, 1),
        conv_33_toC=init_conv_bn(keys[5], cin, cout, 1),
        conv_11=init_conv_bn(keys[6], cin, cout, 1),
        pool_conv_toC=init_conv_bn(keys[7], cin, cout, 1),
    )


# --------------------------------------------------------------------------
# APN forward
# --------------------------------------------------------------------------
def apn_forward(x_nchw, params, image_dim):
    n, cin, h, w = x_nchw.shape
    assert h == w == image_dim
    x = x_nchw.astype(jnp.float32)

    # ----- pyramid (strided convs) -----
    c33 = conv_bn_relu(x,   params["conv_33"], k=3, stride=2, pad=1)   # H/2
    c55 = conv_bn_relu(c33, params["conv_55"], k=5, stride=2, pad=2)   # H/4
    c77 = conv_bn_relu(c55, params["conv_77"], k=7, stride=2, pad=3)   # H/8

    # ----- 1x1 projections to out_channels -----
    c77c = conv_bn_relu(c77, params["conv_77_toC"], k=1, stride=1, pad=0)
    c55c = conv_bn_relu(c55, params["conv_55_toC"], k=1, stride=1, pad=0)
    c33c = conv_bn_relu(c33, params["conv_33_toC"], k=1, stride=1, pad=0)
    c11  = conv_bn_relu(x,   params["conv_11"],     k=1, stride=1, pad=0)

    # ----- global pooling branch -----
    pooled = global_avg_pool(x)                                        # (N, Cin)
    poolc = conv_bn_relu(pooled.reshape(n, cin, 1, 1),
                         params["pool_conv_toC"], k=1, stride=1, pad=0)

    # ----- fused merge + separable bilinear upsampling -----
    return merge_and_upsample(c77c, c55c, c33c, c11, poolc, h)         # NCHW


# --------------------------------------------------------------------------
if __name__ == "__main__":
    N, CIN, COUT, H = 2, 4, 8, 16
    key = jax.random.PRNGKey(0)
    kx, kp = jax.random.split(key)
    x = jax.random.normal(kx, (N, CIN, H, H), jnp.float32)   # NCHW, like PyTorch
    params = init_apn_params(kp, CIN, COUT)

    out = apn_forward(x, params, image_dim=H)
    out = jax.block_until_ready(out)
    assert out.shape == (N, COUT, 8 * H, 8 * H), out.shape
    assert jnp.all(jnp.isfinite(out))
    print("KERNEL_OK")
</pallas_src>

<mosaic_0001>
module attributes {stable_mosaic.version = 11 : i64} {
  func.func @_conv_mm_kernel(%arg0: i32, %arg1: memref<4x36xbf16, #tpu.memory_space<vmem>>, %arg2: memref<36x128xbf16, #tpu.memory_space<vmem>>, %arg3: memref<4x1xf32, #tpu.memory_space<vmem>>, %arg4: memref<4x128xf32, #tpu.memory_space<vmem>>) attributes {dimension_semantics = [#tpu.dimension_semantics<parallel>], iteration_bounds = array<i64: 1>, scalar_prefetch = 0 : i64, scratch_operands = 0 : i64, tpu.core_type = #tpu.core_type<tc>, window_params = [{pipeline_mode = #tpu.pipeline_mode<synchronous>, transform_indices = @transform_0, window_bounds = array<i64: 4, 36>}, {transform_indices = @transform_1, window_bounds = array<i64: 36, 128>}, {pipeline_mode = #tpu.pipeline_mode<synchronous>, transform_indices = @transform_2, window_bounds = array<i64: 4, 1>}, {transform_indices = @transform_3, window_bounds = array<i64: 4, 128>}]} {
    %c0 = arith.constant 0 : index
    %c0_0 = arith.constant 0 : index
    %0 = vector.load %arg1[%c0, %c0_0] : memref<4x36xbf16, #tpu.memory_space<vmem>>, vector<4x36xbf16>
    %c0_1 = arith.constant 0 : index
    %c0_2 = arith.constant 0 : index
    %1 = vector.load %arg2[%c0_1, %c0_2] : memref<36x128xbf16, #tpu.memory_space<vmem>>, vector<36x128xbf16>
    %cst = arith.constant dense<0.000000e+00> : vector<4x128xf32>
    %2 = tpu.matmul %0, %1, %cst {dimension_numbers = #tpu.dot_dimension_numbers<[1], [0], [0], [1], [0, 0, 1, 1], [], []>} : vector<4x36xbf16>, vector<36x128xbf16>, vector<4x128xf32> -> vector<4x128xf32>
    %c0_3 = arith.constant 0 : index
    %c0_4 = arith.constant 0 : index
    %3 = vector.load %arg3[%c0_3, %c0_4] : memref<4x1xf32, #tpu.memory_space<vmem>>, vector<4x1xf32>
    %4 = vector.broadcast %3 : vector<4x1xf32> to vector<4x128xf32>
    %5 = arith.addf %2, %4 : vector<4x128xf32>
    %cst_5 = arith.constant 0.000000e+00 : f32
    %6 = vector.broadcast %cst_5 : f32 to vector<4x128xf32>
    %7 = arith.maximumf %5, %6 : vector<4x128xf32>
    %c0_6 = arith.constant 0 : index
    %c0_7 = arith.constant 0 : index
    %8 = vector.load %arg4[%c0_6, %c0_7] : memref<4x128xf32, #tpu.memory_space<vmem>>, vector<4x128xf32>
    tpu.vector_store %arg4[%c0_6, %c0_7], %7 {strides = array<i32>} : memref<4x128xf32, #tpu.memory_space<vmem>>, vector<4x128xf32>,
    return
  }
  func.func @transform_0(%arg0: i32) -> (i32, i32) {
    %c0_i32 = arith.constant 0 : i32
    %c0_i32_0 = arith.constant 0 : i32
    %c0_i32_1 = arith.constant 0 : i32
    return %c0_i32, %c0_i32_0 : i32, i32
  }
  func.func @transform_1(%arg0: i32) -> (i32, i32) {
    %c0_i32 = arith.constant 0 : i32
    %c0_i32_0 = arith.constant 0 : i32
    return %c0_i32, %arg0 : i32, i32
  }
  func.func @transform_2(%arg0: i32) -> (i32, i32) {
    %c0_i32 = arith.constant 0 : i32
    %c0_i32_0 = arith.constant 0 : i32
    %c0_i32_1 = arith.constant 0 : i32
    return %c0_i32, %c0_i32_0 : i32, i32
  }
  func.func @transform_3(%arg0: i32) -> (i32, i32) {
    %c0_i32 = arith.constant 0 : i32
    %c0_i32_0 = arith.constant 0 : i32
    return %c0_i32, %arg0 : i32, i32
  }
}

</mosaic_0001>

<llo_original>
// kernel: tpu_custom_call.1
$region0: #{tpu_custom_call.1}
  #allocation0 [shape = 'u32[]', space=smem, size = 0x4, offset = 0x4, fixed_abs, tag = 'smem constant byte address 0x4 - core index']
  #allocation1 [shape = 'u32[72,128]{1,0:T(1,128)}', space=vmem, size = 0x9000, scoped, tag = 'internal scratch']
  %s0 = inlined_call_operand.vmem [shape: bf16[4,36], index: 0, kind: input, shape index: {}]
  %s1 = inlined_call_operand.hbm [shape: bf16[36,128], index: 1, kind: input, shape index: {}]
  %s2 = inlined_call_operand.vmem [shape: f32[4,1], index: 2, kind: input, shape index: {}]
  %s3 = inlined_call_operand.hbm [shape: f32[4,128], index: 3, kind: output, shape index: {}]
  %s4 = sld [smem:[#allocation0]]
  $region26: #{tpu_custom_call.1} parent=0
    _
  %s6 = ssub.s32 1, %s4
  %s7 = scalar_select 0, %s6, %s4
  $region1: #{tpu_custom_call.1} parent=0
    #allocation2 [shape = 'u8[10240]{0}', space=vmem, size = 0x2800, scoped, tag = 'input window, operand 1, single buffered']
    #allocation3 [shape = 's32[1]{0}', space=sflag, size = 0x4, scoped, tag = 'scoped memory for tpu_custom_call.1']
    #allocation4 [shape = 's32[1]{0}', space=sflag, size = 0x4, scoped, tag = 'scoped memory for tpu_custom_call.1']
    #allocation5 [shape = 'u8[2048]{0}', space=vmem, size = 0x800, scoped, tag = 'output window, operand 0, single buffered']
    %8 = vsyncpa [#allocation3], 0
    %9 = vsyncpa [#allocation4], 0
    // Predicated region
    $region2: #{tpu_custom_call.1} parent=1 // pred_check
      _
    $region3: #{tpu_custom_call.1} parent=1 // pred_check_branch
      %11 = sbr.rel (0) target = $region5
    $region4: #{tpu_custom_call.1} parent=1 // pred_region
      _
    $region5: #{tpu_custom_call.1} parent=1 // pred_fallthru
      _
    // Predicated region
    $region6: #{tpu_custom_call.1} parent=1 // pred_check
      _
    $region7: #{tpu_custom_call.1} parent=1 // pred_check_branch
      %13 = sbr.rel (0) target = $region9
    $region8: #{tpu_custom_call.1} parent=1 // pred_region
      %15 = vsyncadd [#allocation3], 0
      %s16 = sshll.u32 %s1, 4
      %s17 = int_to_ptr.hbm [resolvable:$true] %s16
      %s18 = sshll.u32 [#allocation2], 4
      %s19 = int_to_ptr.vmem [resolvable:$true] %s18
      %24 = dma.hbm_to_vmem [thread:$0]  %s17, 320, %s19, [#allocation3], 64, 64, 4
    $region9: #{tpu_custom_call.1} parent=1 // pred_fallthru
      _
    // Predicated region
    $region10: #{tpu_custom_call.1} parent=1 // pred_check
      _
    $region11: #{tpu_custom_call.1} parent=1 // pred_check_branch
      %26 = sbr.rel (0) target = $region13
    $region12: #{tpu_custom_call.1} parent=1 // pred_region
      _
    $region13: #{tpu_custom_call.1} parent=1 // pred_fallthru
      _
    // Predicated region
    $region14: #{tpu_custom_call.1} parent=1 // pred_check
      _
    $region15: #{tpu_custom_call.1} parent=1 // pred_check_branch
      %28 = sbr.rel (0) target = $region17
    $region16: #{tpu_custom_call.1} parent=1 // pred_region
      %30 = dma.done [#allocation3], 320
    $region17: #{tpu_custom_call.1} parent=1 // pred_fallthru
      _
    %v32 = vld [vmem:[%s0] sm:$0x3]
    %v33 = vld [vmem:[#allocation2] sm:$0xf]
    %v34 = vld [vmem:[#allocation2 + $0x4] sm:$0xf]
    %v35 = vld [vmem:[#allocation2 + $0x8] sm:$0xf]
    %v36 = vld [vmem:[#allocation2 + $0xc] sm:$0xf]
    %v37 = vld [vmem:[#allocation2 + $0x10] sm:$0x3]
    %v38 = vld [vmem:[%s2] sm:$0xf]
    %40 = vset.pattern.permute.xlu0 0
    %41 = vperm.xlu0 %40, %v38
    %v42 = vpop.permute.xlu0 %41
    %v49 = vunpack.c.l.b16 %v33
    %v50 = vunpack.c.l.b16 %v34
    %v51 = vunpack.c.l.b16 %v35
    %v52 = vunpack.c.l.b16 %v36
    %v53 = vunpack.c.l.b16 %v37
    %v54 = vpack.c.b16 %v50, %v49
    %v55 = vpack.c.b16 %v52, %v51
    %v56 = vpack.c.b16 %v53, %v53
    %vm59 = vcmask 293888
    %v61 = vsel %vm59, %v32, 0
    %vm63 = vcmask 1041408
    %v65 = vsel %vm63, %v56, 0
    %67 = vmatpush.bf16.msra.mxu0 0
    %68 = vmatpush.bf16.msra.mxu0 0
    %69 = vmatpush.bf16.msra.mxu0 0
    %70 = vmatpush.bf16.msra.mxu0 0
    %71 = vmatpush.bf16.msra.mxu0 0
    %72 = vmatpush.bf16.msra.mxu0 %v65
    %73 = vmatpush.bf16.msra.mxu0 %v55
    %74 = vmatpush.bf16.msra.mxu0 %v54
    %75 = vmatmul.bf16.gmra.mxu0 %v61
    %v76 = vpop.f32.mrf.mxu0
    %v77 = vadd.f32 %v42, %v76
    %v78 = vpop.f32.mrf.mxu0
    %79 = vdwg.mxu0
    %v80 = vmax.f32 %v77, 0.0
    %81 = vst [vmem:[#allocation5] sm:$0xf] %v80
    // Predicated region
    $region18: #{tpu_custom_call.1} parent=1 // pred_check
      _
    $region19: #{tpu_custom_call.1} parent=1 // pred_check_branch
      %83 = sbr.rel (0) target = $region21
    $region20: #{tpu_custom_call.1} parent=1 // pred_region
      %85 = vsyncadd [#allocation4], 0
      %s87 = sshll.u32 [#allocation5], 4
      %s88 = int_to_ptr.vmem [resolvable:$true] %s87
      %s89 = sshll.u32 %s3, 4
      %s90 = int_to_ptr.hbm [resolvable:$true] %s89
      %92 = dma.vmem_to_hbm [thread:$0]  %s88, 64, %s90, [#allocation4]
    $region21: #{tpu_custom_call.1} parent=1 // pred_fallthru
      _
    // Predicated region
    $region22: #{tpu_custom_call.1} parent=1 // pred_check
      _
    $region23: #{tpu_custom_call.1} parent=1 // pred_check_branch
      %94 = sbr.rel (0) target = $region25
    $region24: #{tpu_custom_call.1} parent=1 // pred_region
      %96 = dma.done [#allocation4], 64
    $region25: #{tpu_custom_call.1} parent=1 // pred_fallthru
      _
    %97 = vsyncpa [#allocation3], 1
    %98 = vsyncpa [#allocation4], 1

</llo_original>
